<compile_context>
chip_gen: v5e
topology: v5e:2x2
jax: 0.10.0
libtpu: 0.0.40
codegen_flags: <defaults>
</compile_context>

<pallas_src>
import math
import functools

import numpy as np
import jax
import jax.numpy as jnp
from jax import lax
from jax.experimental import pallas as pl
from jax.experimental.pallas import tpu as pltpu

# ---- small config consistent with the module's forward ----
BATCH = 2
CTX = 8            # ctx_size == T
N_EMBD = 32        # C
N_HEAD = 4
HEAD_SIZE = N_EMBD // N_HEAD
ROPE_THETA = 10000.0
LANE = 128         # TPU lane width; kernel output is padded to a multiple of this


# ----------------------------- helpers -----------------------------
def precompute_freqs(T, head_size, theta=ROPE_THETA):
    inv = 1.0 / (theta ** (np.arange(0, head_size, 2, dtype=np.float32) / head_size))
    t = np.arange(T, dtype=np.float32)
    angles = np.outer(t, inv)                                 # (T, hs//2)
    return np.cos(angles).astype(np.float32), np.sin(angles).astype(np.float32)


def _grid_steps(batch, seq):
    """Size-based (platform-independent) fold policy.

    Fold the whole batch into one grid step while the folded token count is
    small: the kernel is launch/DMA-latency bound there, folding amortizes the
    ~0.35us/step overhead and raises lane occupancy of the tokens-on-lane
    layout.  At real sizes go back to grid=(B,) so both v7x TensorCores get
    work and the fold's O(B^2) masked-out attention work is avoided.
    """
    return 1 if batch * seq <= 128 else batch


# ----------------------------- Pallas kernel -----------------------------
def _attention_kernel(xt_ref, wqkv_ref, bqkv_ref, wo_ref, bo_ref,
                      cos_ref, sin_ref, o_ref,
                      *, n_head, head_size, seq_len, n_fold):
    C = n_head * head_size
    rows = xt_ref.shape[1]
    out_pad = o_ref.shape[-1]

    # --- one fused MXU pass: [q ; k ; v ; rot(q) ; rot(k)]^T = W_fused @ x^T ---
    # bf16 operands, f32 accumulate.  RoPE pair-swap + 1/sqrt(hs) were folded
    # into W_fused on the host, so no extra rotation matmul / roll is needed.
    xt = xt_ref[...].astype(jnp.bfloat16)                      # (C, rows)
    qkv_t = jnp.dot(wqkv_ref[...], xt,
                    preferred_element_type=jnp.float32)        # (5C, rows) f32
    qkv_t = qkv_t + bqkv_ref[...]                              # bias bcast over lanes

    # 8-aligned SUBLANE slices only (no lane-axis slicing, no concatenate of
    # per-head results).
    q_t = qkv_t[0 * C:1 * C, :]
    k_t = qkv_t[1 * C:2 * C, :]
    v_t = qkv_t[2 * C:3 * C, :]
    qr_t = qkv_t[3 * C:4 * C, :]
    kr_t = qkv_t[4 * C:5 * C, :]

    # --- RoPE: x*cos + rot(x)*sin, element-wise in f32 (VPU only) ---
    # Compact (hs, rows) tables broadcast across head sublanes in-kernel.
    cos = jnp.concatenate([cos_ref[...]] * n_head, axis=0)     # (C, rows)
    sin = jnp.concatenate([sin_ref[...]] * n_head, axis=0)
    q_t = q_t * cos + qr_t * sin
    k_t = k_t * cos + kr_t * sin

    # Single bf16 cast per activation (not per head-slice).
    q_b = q_t.astype(jnp.bfloat16)
    k_b = k_t.astype(jnp.bfloat16)
    v_b = v_t.astype(jnp.bfloat16)
    wo = wo_ref[...]                                           # (C, out_pad) bf16

    # --- additive causal mask, built in-kernel (block-diagonal across the
    # folded batch): a handful of VPU iota/compare ops instead of an
    # O(rows^2)*4B HBM read + VMEM buffer. ---
    r = lax.broadcasted_iota(jnp.int32, (rows, rows), 0)
    c = lax.broadcasted_iota(jnp.int32, (rows, rows), 1)
    same_blk = jnp.zeros((rows, rows), dtype=jnp.bool_)
    for b in range(n_fold):                                    # n_fold is tiny & static
        lo, hi = b * seq_len, (b + 1) * seq_len
        same_blk = same_blk | ((r >= lo) & (r < hi) & (c >= lo) & (c < hi))
    mask = jnp.where((r >= c) & same_blk,
                     jnp.float32(0.0), jnp.float32(-1e30))     # (rows, rows)

    acc = jnp.zeros((rows, out_pad), jnp.float32)

    # --- per-head attention (static unroll; heads live on sublanes) ---
    # Scale is pre-folded into q; per-head outputs fold directly into the
    # output-projection accumulator.
    # TODO(synk): at production shapes switch this static unroll to a
    # lax.fori_loop / grid axis over heads with a VMEM scratch accumulator
    # (bounds vreg live ranges), make `rows` a multiple of 128/256 for lane
    # density, and pick head/key tile sizes that fill the 128/256-deep MXU.
    for h in range(n_head):
        lo = h * head_size
        hi = lo + head_size
        q_h = q_b[lo:hi, :]                                    # (hs, rows) bf16
        k_h = k_b[lo:hi, :]
        v_h = v_b[lo:hi, :]
        # att[i,j] = sum_d q[d,i] * k[d,j] : contract the sublane axis of both
        # operands directly -- the MXU streams transposed operands natively,
        # so no XLU transpose is emitted.
        att = lax.dot_general(q_h, k_h, (((0,), (0,)), ((), ())),
                              preferred_element_type=jnp.float32) + mask
        att = att - jnp.max(att, axis=-1, keepdims=True)       # stable softmax
        p = jnp.exp(att)
        p = p * pl.reciprocal(jnp.sum(p, axis=-1, keepdims=True), approx=False)
        # oh[i,d] = sum_j p[i,j] * v[d,j]
        oh = lax.dot_general(p.astype(jnp.bfloat16), v_h,
                             (((1,), (1,)), ((), ())),
                             preferred_element_type=jnp.float32)   # (rows, hs)
        acc = acc + jnp.dot(oh.astype(jnp.bfloat16), wo[lo:hi, :],
                            preferred_element_type=jnp.float32)

    # Lane-dense (128-multiple) store: full unmasked vst; pad sliced off outside.
    # TODO(synk): store bf16 / drop the pad once C is a natural 128-multiple.
    o_ref[...] = (acc + bo_ref[...]).astype(o_ref.dtype)


# ----------------------------- wrapper -----------------------------
def attention_forward(x, params):
    B, T, C = x.shape
    H, hs = N_HEAD, HEAD_SIZE
    G = _grid_steps(B, T)                    # grid steps (size-based policy)
    nb = B // G                              # batch elements folded per grid step
    rows = nb * T                            # tokens handled per grid step
    out_pad = ((C + LANE - 1) // LANE) * LANE

    # ---- host-side, one-time parameter prep ----
    scale = 1.0 / math.sqrt(hs)              # folded into the Q rows
    j = np.arange(C // 2)
    P = np.zeros((C, C), np.float32)         # (P y)[2j] = -y[2j+1], (P y)[2j+1] = y[2j]
    P[2 * j, 2 * j + 1] = -1.0
    P[2 * j + 1, 2 * j] = 1.0

    Wq = np.asarray(params["Wq"], np.float32) * scale
    bq = np.asarray(params["bq"], np.float32) * scale
    Wk = np.asarray(params["Wk"], np.float32)
    bk = np.asarray(params["bk"], np.float32)
    Wv = np.asarray(params["Wv"], np.float32)
    bv = np.asarray(params["bv"], np.float32)
    Wo = np.asarray(params["Wo"], np.float32)
    bo = np.asarray(params["bo"], np.float32)

    # Fused projection emitting q, k, v and their RoPE rotated partners.
    w_fused = np.concatenate([Wq, Wk, Wv, P @ Wq, P @ Wk], axis=0)             # (5C, C)
    b_fused = np.concatenate([bq, bk, bv, P @ bq, P @ bk]).reshape(5 * C, 1)   # (5C, 1)

    wo_p = np.zeros((C, out_pad), np.float32)        # (in, out), lane-padded to 128
    wo_p[:, :C] = Wo.T
    bo_p = np.zeros((1, out_pad), np.float32)
    bo_p[0, :C] = bo

    # Compact RoPE tables: (hs, rows) -- only head_size distinct sublanes are
    # shipped; the kernel broadcasts across heads.
    cos, sin = precompute_freqs(T, hs)                           # (T, hs//2)
    cos_h = np.repeat(cos, 2, axis=-1)                           # (T, hs)
    sin_h = np.repeat(sin, 2, axis=-1)
    cos_t = np.ascontiguousarray(np.tile(cos_h, (nb, 1)).T)      # (hs, rows)
    sin_t = np.ascontiguousarray(np.tile(sin_h, (nb, 1)).T)

    # x presented transposed per grid step: (G, C, rows).
    x_t = jnp.swapaxes(x.reshape(G, rows, C), 1, 2)

    kernel = functools.partial(_attention_kernel, n_head=H, head_size=hs,
                               seq_len=T, n_fold=nb)

    # Grid-invariant operands: on the multi-step (grid=(B,)) path their index
    # map is constant, so a second pipeline buffer is pure VMEM waste ->
    # single-buffer them.  (With G == 1 the default is already minimal.)
    inv_kwargs = {} if G == 1 else {"pipeline_mode": pl.Buffered(1)}
    shared = lambda shape: pl.BlockSpec(shape, lambda g: (0, 0), **inv_kwargs)

    out = pl.pallas_call(
        kernel,
        out_shape=jax.ShapeDtypeStruct((G, rows, out_pad), jnp.float32),
        grid=(G,),
        in_specs=[
            pl.BlockSpec((None, C, rows), lambda g: (g, 0, 0)),  # x^T (per step)
            shared((5 * C, C)),                                  # fused W   (bf16)
            shared((5 * C, 1)),                                  # fused bias
            shared((C, out_pad)),                                # Wo^T, lane-padded (bf16)
            shared((1, out_pad)),                                # bo, lane-padded
            shared((hs, rows)),                                  # compact cos table
            shared((hs, rows)),                                  # compact sin table
        ],
        out_specs=pl.BlockSpec((None, rows, out_pad), lambda g: (g, 0, 0)),
        # TODO(synk): when scaling tiles, set vmem_limit_bytes explicitly for
        # v5e's 16 MiB scoped default (everything here is a few KB).
        compiler_params=pltpu.CompilerParams(dimension_semantics=("parallel",)),
    )(x_t,
      jnp.asarray(w_fused, jnp.bfloat16),
      jnp.asarray(b_fused),
      jnp.asarray(wo_p, jnp.bfloat16),
      jnp.asarray(bo_p),
      jnp.asarray(cos_t),
      jnp.asarray(sin_t))

    return out.reshape(B, T, out_pad)[:, :, :C]


# ----------------------------- pure-JAX reference -----------------------------
def rope_ref(xq, cos, sin):
    B, T, H, hs = xq.shape
    xp = xq.reshape(B, T, H, hs // 2, 2)
    xr, xi = xp[..., 0], xp[..., 1]
    c = cos[None, :, None, :]
    s = sin[None, :, None, :]
    out_r = xr * c - xi * s
    out_i = xr * s + xi * c
    return jnp.stack([out_r, out_i], axis=-1).reshape(B, T, H, hs)


def reference_forward(x, params, cos, sin):
    B, T, C = x.shape
    H, hs = N_HEAD, HEAD_SIZE
    lin = lambda a, W, b: a @ W.T + b
    q = lin(x, params["Wq"], params["bq"]).reshape(B, T, H, hs)
    k = lin(x, params["Wk"], params["bk"]).reshape(B, T, H, hs)
    v = lin(x, params["Wv"], params["bv"]).reshape(B, T, H, hs)
    q = rope_ref(q, cos, sin)
    k = rope_ref(k, cos, sin)
    q = q.transpose(0, 2, 1, 3)
    k = k.transpose(0, 2, 1, 3)
    v = v.transpose(0, 2, 1, 3)
    att = q @ k.transpose(0, 1, 3, 2) / math.sqrt(hs)
    tril = np.tril(np.ones((T, T), dtype=bool))
    att = jnp.where(tril[None, None], att, -jnp.inf)
    att = jax.nn.softmax(att, axis=-1)
    out = att @ v
    out = out.transpose(0, 2, 1, 3).reshape(B, T, C)
    return lin(out, params["Wo"], params["bo"])


# ----------------------------- main -----------------------------
if __name__ == "__main__":
    key = jax.random.PRNGKey(0)
    ks = jax.random.split(key, 9)
    B, T, C = BATCH, CTX, N_EMBD

    x = jax.random.normal(ks[0], (B, T, C), dtype=jnp.float32)

    w_scale = 1.0 / math.sqrt(C)
    params = {
        # PyTorch-layout (out, in) weights + (C,) biases, deterministically initialized.
        "Wq": jax.random.normal(ks[1], (C, C), jnp.float32) * w_scale,
        "Wk": jax.random.normal(ks[2], (C, C), jnp.float32) * w_scale,
        "Wv": jax.random.normal(ks[3], (C, C), jnp.float32) * w_scale,
        "Wo": jax.random.normal(ks[4], (C, C), jnp.float32) * w_scale,
        "bq": jax.random.normal(ks[5], (C,), jnp.float32) * 0.01,
        "bk": jax.random.normal(ks[6], (C,), jnp.float32) * 0.01,
        "bv": jax.random.normal(ks[7], (C,), jnp.float32) * 0.01,
        "bo": jax.random.normal(ks[8], (C,), jnp.float32) * 0.01,
    }

    out = attention_forward(x, params)
    out = jax.block_until_ready(out)

    cos, sin = precompute_freqs(T, HEAD_SIZE)
    ref = jax.block_until_ready(
        reference_forward(x, params, jnp.asarray(cos), jnp.asarray(sin)))

    # Tolerance sized for bf16 MXU operands with f32 accumulation; reference is
    # pure f32.
    np.testing.assert_allclose(np.asarray(out), np.asarray(ref), rtol=3e-2, atol=3e-2)
    # TODO(synk): cache_k/cache_v buffers are unused by this full-sequence
    # (training-style) forward, so they are not materialized.
    print("KERNEL_OK")
</pallas_src>

<mosaic_0001>
module attributes {stable_mosaic.version = 11 : i64} {
  func.func @_attention_kernel(%arg0: i32, %arg1: memref<1x32x16xf32, #tpu.memory_space<vmem>>, %arg2: memref<160x32xbf16, #tpu.memory_space<vmem>>, %arg3: memref<160x1xf32, #tpu.memory_space<vmem>>, %arg4: memref<32x128xbf16, #tpu.memory_space<vmem>>, %arg5: memref<1x128xf32, #tpu.memory_space<vmem>>, %arg6: memref<8x16xf32, #tpu.memory_space<vmem>>, %arg7: memref<8x16xf32, #tpu.memory_space<vmem>>, %arg8: memref<1x16x128xf32, #tpu.memory_space<vmem>>) attributes {dimension_semantics = [#tpu.dimension_semantics<parallel>], iteration_bounds = array<i64: 1>, scalar_prefetch = 0 : i64, scratch_operands = 0 : i64, tpu.core_type = #tpu.core_type<tc>, window_params = [{transform_indices = @transform_0, window_bounds = array<i64: 1, 32, 16>}, {pipeline_mode = #tpu.pipeline_mode<synchronous>, transform_indices = @transform_1, window_bounds = array<i64: 160, 32>}, {pipeline_mode = #tpu.pipeline_mode<synchronous>, transform_indices = @transform_2, window_bounds = array<i64: 160, 1>}, {pipeline_mode = #tpu.pipeline_mode<synchronous>, transform_indices = @transform_3, window_bounds = array<i64: 32, 128>}, {pipeline_mode = #tpu.pipeline_mode<synchronous>, transform_indices = @transform_4, window_bounds = array<i64: 1, 128>}, {pipeline_mode = #tpu.pipeline_mode<synchronous>, transform_indices = @transform_5, window_bounds = array<i64: 8, 16>}, {pipeline_mode = #tpu.pipeline_mode<synchronous>, transform_indices = @transform_6, window_bounds = array<i64: 8, 16>}, {transform_indices = @transform_7, window_bounds = array<i64: 1, 16, 128>}]} {
    %c0 = arith.constant 0 : index
    %c0_0 = arith.constant 0 : index
    %c0_1 = arith.constant 0 : index
    %0 = vector.load %arg1[%c0, %c0_0, %c0_1] : memref<1x32x16xf32, #tpu.memory_space<vmem>>, vector<1x32x16xf32>
    %1 = vector.shape_cast %0 : vector<1x32x16xf32> to vector<32x16xf32>
    %2 = arith.truncf %1 : vector<32x16xf32> to vector<32x16xbf16>
    %c0_2 = arith.constant 0 : index
    %c0_3 = arith.constant 0 : index
    %3 = vector.load %arg2[%c0_2, %c0_3] : memref<160x32xbf16, #tpu.memory_space<vmem>>, vector<160x32xbf16>
    %cst = arith.constant dense<0.000000e+00> : vector<160x16xf32>
    %4 = tpu.matmul %3, %2, %cst {dimension_numbers = #tpu.dot_dimension_numbers<[1], [0], [0], [1], [0, 0, 1, 1], [], []>} : vector<160x32xbf16>, vector<32x16xbf16>, vector<160x16xf32> -> vector<160x16xf32>
    %c0_4 = arith.constant 0 : index
    %c0_5 = arith.constant 0 : index
    %5 = vector.load %arg3[%c0_4, %c0_5] : memref<160x1xf32, #tpu.memory_space<vmem>>, vector<160x1xf32>
    %6 = vector.broadcast %5 : vector<160x1xf32> to vector<160x16xf32>
    %7 = arith.addf %4, %6 : vector<160x16xf32>
    %8 = vector.extract_strided_slice %7 {offsets = [0, 0], sizes = [32, 16], strides = [1, 1]} : vector<160x16xf32> to vector<32x16xf32>
    %9 = vector.extract_strided_slice %7 {offsets = [32, 0], sizes = [32, 16], strides = [1, 1]} : vector<160x16xf32> to vector<32x16xf32>
    %10 = vector.extract_strided_slice %7 {offsets = [64, 0], sizes = [32, 16], strides = [1, 1]} : vector<160x16xf32> to vector<32x16xf32>
    %11 = vector.extract_strided_slice %7 {offsets = [96, 0], sizes = [32, 16], strides = [1, 1]} : vector<160x16xf32> to vector<32x16xf32>
    %12 = vector.extract_strided_slice %7 {offsets = [128, 0], sizes = [32, 16], strides = [1, 1]} : vector<160x16xf32> to vector<32x16xf32>
    %c0_6 = arith.constant 0 : index
    %c0_7 = arith.constant 0 : index
    %13 = vector.load %arg6[%c0_6, %c0_7] : memref<8x16xf32, #tpu.memory_space<vmem>>, vector<8x16xf32>
    %14 = tpu.concatenate %13, %13, %13, %13 in 0 : vector<8x16xf32>, vector<8x16xf32>, vector<8x16xf32>, vector<8x16xf32> -> vector<32x16xf32>
    %c0_8 = arith.constant 0 : index
    %c0_9 = arith.constant 0 : index
    %15 = vector.load %arg7[%c0_8, %c0_9] : memref<8x16xf32, #tpu.memory_space<vmem>>, vector<8x16xf32>
    %16 = tpu.concatenate %15, %15, %15, %15 in 0 : vector<8x16xf32>, vector<8x16xf32>, vector<8x16xf32>, vector<8x16xf32> -> vector<32x16xf32>
    %17 = arith.mulf %8, %14 : vector<32x16xf32>
    %18 = arith.mulf %11, %16 : vector<32x16xf32>
    %19 = arith.addf %17, %18 : vector<32x16xf32>
    %20 = arith.mulf %9, %14 : vector<32x16xf32>
    %21 = arith.mulf %12, %16 : vector<32x16xf32>
    %22 = arith.addf %20, %21 : vector<32x16xf32>
    %23 = arith.truncf %19 : vector<32x16xf32> to vector<32x16xbf16>
    %24 = arith.truncf %22 : vector<32x16xf32> to vector<32x16xbf16>
    %25 = arith.truncf %10 : vector<32x16xf32> to vector<32x16xbf16>
    %c0_10 = arith.constant 0 : index
    %c0_11 = arith.constant 0 : index
    %26 = vector.load %arg4[%c0_10, %c0_11] : memref<32x128xbf16, #tpu.memory_space<vmem>>, vector<32x128xbf16>
    %27 = tpu.iota {dimensions = array<i32: 0>} : vector<16x16xi32>
    %28 = tpu.iota {dimensions = array<i32: 1>} : vector<16x16xi32>
    %false = arith.constant false
    %29 = vector.broadcast %false : i1 to vector<16x16xi1>
    %c0_i32 = arith.constant 0 : i32
    %30 = vector.broadcast %c0_i32 : i32 to vector<16x16xi32>
    %31 = arith.cmpi sge, %27, %30 : vector<16x16xi32>
    %c8_i32 = arith.constant 8 : i32
    %32 = vector.broadcast %c8_i32 : i32 to vector<16x16xi32>
    %33 = arith.cmpi slt, %27, %32 : vector<16x16xi32>
    %34 = arith.andi %31, %33 : vector<16x16xi1>
    %c0_i32_12 = arith.constant 0 : i32
    %35 = vector.broadcast %c0_i32_12 : i32 to vector<16x16xi32>
    %36 = arith.cmpi sge, %28, %35 : vector<16x16xi32>
    %37 = arith.andi %34, %36 : vector<16x16xi1>
    %c8_i32_13 = arith.constant 8 : i32
    %38 = vector.broadcast %c8_i32_13 : i32 to vector<16x16xi32>
    %39 = arith.cmpi slt, %28, %38 : vector<16x16xi32>
    %40 = arith.andi %37, %39 : vector<16x16xi1>
    %41 = arith.ori %29, %40 : vector<16x16xi1>
    %c8_i32_14 = arith.constant 8 : i32
    %42 = vector.broadcast %c8_i32_14 : i32 to vector<16x16xi32>
    %43 = arith.cmpi sge, %27, %42 : vector<16x16xi32>
    %c16_i32 = arith.constant 16 : i32
    %44 = vector.broadcast %c16_i32 : i32 to vector<16x16xi32>
    %45 = arith.cmpi slt, %27, %44 : vector<16x16xi32>
    %46 = arith.andi %43, %45 : vector<16x16xi1>
    %c8_i32_15 = arith.constant 8 : i32
    %47 = vector.broadcast %c8_i32_15 : i32 to vector<16x16xi32>
    %48 = arith.cmpi sge, %28, %47 : vector<16x16xi32>
    %49 = arith.andi %46, %48 : vector<16x16xi1>
    %c16_i32_16 = arith.constant 16 : i32
    %50 = vector.broadcast %c16_i32_16 : i32 to vector<16x16xi32>
    %51 = arith.cmpi slt, %28, %50 : vector<16x16xi32>
    %52 = arith.andi %49, %51 : vector<16x16xi1>
    %53 = arith.ori %41, %52 : vector<16x16xi1>
    %54 = arith.cmpi sge, %27, %28 : vector<16x16xi32>
    %55 = arith.andi %54, %53 : vector<16x16xi1>
    %cst_17 = arith.constant 0.000000e+00 : f32
    %cst_18 = arith.constant -1.000000e+30 : f32
    %56 = vector.broadcast %cst_17 : f32 to vector<16x16xf32>
    %57 = vector.broadcast %cst_18 : f32 to vector<16x16xf32>
    %58 = arith.select %55, %56, %57 : vector<16x16xi1>, vector<16x16xf32>
    %cst_19 = arith.constant 0.000000e+00 : f32
    %59 = vector.broadcast %cst_19 : f32 to vector<16x128xf32>
    %60 = vector.extract_strided_slice %23 {offsets = [0, 0], sizes = [8, 16], strides = [1, 1]} : vector<32x16xbf16> to vector<8x16xbf16>
    %61 = vector.extract_strided_slice %24 {offsets = [0, 0], sizes = [8, 16], strides = [1, 1]} : vector<32x16xbf16> to vector<8x16xbf16>
    %62 = vector.extract_strided_slice %25 {offsets = [0, 0], sizes = [8, 16], strides = [1, 1]} : vector<32x16xbf16> to vector<8x16xbf16>
    %cst_20 = arith.constant dense<0.000000e+00> : vector<16x16xf32>
    %63 = tpu.matmul %60, %61, %cst_20 {dimension_numbers = #tpu.dot_dimension_numbers<[0], [0], [1], [1], [0, 1, 1, 1], [], []>} : vector<8x16xbf16>, vector<8x16xbf16>, vector<16x16xf32> -> vector<16x16xf32>
    %64 = arith.addf %63, %58 : vector<16x16xf32>
    %cst_21 = arith.constant dense<0xFF800000> : vector<16xf32>
    %65 = vector.multi_reduction <maximumf>, %64, %cst_21 [1] : vector<16x16xf32> to vector<16xf32>
    %66 = vector.shape_cast %65 : vector<16xf32> to vector<16x1xf32>
    %67 = vector.broadcast %66 : vector<16x1xf32> to vector<16x16xf32>
    %68 = arith.subf %64, %67 : vector<16x16xf32>
    %69 = math.exp %68 : vector<16x16xf32>
    %cst_22 = arith.constant dense<0.000000e+00> : vector<16xf32>
    %70 = vector.multi_reduction <add>, %69, %cst_22 [1] : vector<16x16xf32> to vector<16xf32>
    %71 = vector.shape_cast %70 : vector<16xf32> to vector<16x1xf32>
    %72 = tpu.reciprocal %71 : vector<16x1xf32> -> vector<16x1xf32>
    %73 = vector.broadcast %72 : vector<16x1xf32> to vector<16x16xf32>
    %74 = arith.mulf %69, %73 : vector<16x16xf32>
    %75 = arith.truncf %74 : vector<16x16xf32> to vector<16x16xbf16>
    %cst_23 = arith.constant dense<0.000000e+00> : vector<16x8xf32>
    %76 = tpu.matmul %75, %62, %cst_23 {dimension_numbers = #tpu.dot_dimension_numbers<[1], [1], [0], [0], [0, 0, 1, 0], [], []>} : vector<16x16xbf16>, vector<8x16xbf16>, vector<16x8xf32> -> vector<16x8xf32>
    %77 = arith.truncf %76 : vector<16x8xf32> to vector<16x8xbf16>
    %78 = vector.extract_strided_slice %26 {offsets = [0, 0], sizes = [8, 128], strides = [1, 1]} : vector<32x128xbf16> to vector<8x128xbf16>
    %cst_24 = arith.constant dense<0.000000e+00> : vector<16x128xf32>
    %79 = tpu.matmul %77, %78, %cst_24 {dimension_numbers = #tpu.dot_dimension_numbers<[1], [0], [0], [1], [0, 0, 1, 1], [], []>} : vector<16x8xbf16>, vector<8x128xbf16>, vector<16x128xf32> -> vector<16x128xf32>
    %80 = arith.addf %59, %79 : vector<16x128xf32>
    %81 = vector.extract_strided_slice %23 {offsets = [8, 0], sizes = [8, 16], strides = [1, 1]} : vector<32x16xbf16> to vector<8x16xbf16>
    %82 = vector.extract_strided_slice %24 {offsets = [8, 0], sizes = [8, 16], strides = [1, 1]} : vector<32x16xbf16> to vector<8x16xbf16>
    %83 = vector.extract_strided_slice %25 {offsets = [8, 0], sizes = [8, 16], strides = [1, 1]} : vector<32x16xbf16> to vector<8x16xbf16>
    %cst_25 = arith.constant dense<0.000000e+00> : vector<16x16xf32>
    %84 = tpu.matmul %81, %82, %cst_25 {dimension_numbers = #tpu.dot_dimension_numbers<[0], [0], [1], [1], [0, 1, 1, 1], [], []>} : vector<8x16xbf16>, vector<8x16xbf16>, vector<16x16xf32> -> vector<16x16xf32>
    %85 = arith.addf %84, %58 : vector<16x16xf32>
    %cst_26 = arith.constant dense<0xFF800000> : vector<16xf32>
    %86 = vector.multi_reduction <maximumf>, %85, %cst_26 [1] : vector<16x16xf32> to vector<16xf32>
    %87 = vector.shape_cast %86 : vector<16xf32> to vector<16x1xf32>
    %88 = vector.broadcast %87 : vector<16x1xf32> to vector<16x16xf32>
    %89 = arith.subf %85, %88 : vector<16x16xf32>
    %90 = math.exp %89 : vector<16x16xf32>
    %cst_27 = arith.constant dense<0.000000e+00> : vector<16xf32>
    %91 = vector.multi_reduction <add>, %90, %cst_27 [1] : vector<16x16xf32> to vector<16xf32>
    %92 = vector.shape_cast %91 : vector<16xf32> to vector<16x1xf32>
    %93 = tpu.reciprocal %92 : vector<16x1xf32> -> vector<16x1xf32>
    %94 = vector.broadcast %93 : vector<16x1xf32> to vector<16x16xf32>
    %95 = arith.mulf %90, %94 : vector<16x16xf32>
    %96 = arith.truncf %95 : vector<16x16xf32> to vector<16x16xbf16>
    %cst_28 = arith.constant dense<0.000000e+00> : vector<16x8xf32>
    %97 = tpu.matmul %96, %83, %cst_28 {dimension_numbers = #tpu.dot_dimension_numbers<[1], [1], [0], [0], [0, 0, 1, 0], [], []>} : vector<16x16xbf16>, vector<8x16xbf16>, vector<16x8xf32> -> vector<16x8xf32>
    %98 = arith.truncf %97 : vector<16x8xf32> to vector<16x8xbf16>
    %99 = vector.extract_strided_slice %26 {offsets = [8, 0], sizes = [8, 128], strides = [1, 1]} : vector<32x128xbf16> to vector<8x128xbf16>
    %cst_29 = arith.constant dense<0.000000e+00> : vector<16x128xf32>
    %100 = tpu.matmul %98, %99, %cst_29 {dimension_numbers = #tpu.dot_dimension_numbers<[1], [0], [0], [1], [0, 0, 1, 1], [], []>} : vector<16x8xbf16>, vector<8x128xbf16>, vector<16x128xf32> -> vector<16x128xf32>
    %101 = arith.addf %80, %100 : vector<16x128xf32>
    %102 = vector.extract_strided_slice %23 {offsets = [16, 0], sizes = [8, 16], strides = [1, 1]} : vector<32x16xbf16> to vector<8x16xbf16>
    %103 = vector.extract_strided_slice %24 {offsets = [16, 0], sizes = [8, 16], strides = [1, 1]} : vector<32x16xbf16> to vector<8x16xbf16>
    %104 = vector.extract_strided_slice %25 {offsets = [16, 0], sizes = [8, 16], strides = [1, 1]} : vector<32x16xbf16> to vector<8x16xbf16>
    %cst_30 = arith.constant dense<0.000000e+00> : vector<16x16xf32>
    %105 = tpu.matmul %102, %103, %cst_30 {dimension_numbers = #tpu.dot_dimension_numbers<[0], [0], [1], [1], [0, 1, 1, 1], [], []>} : vector<8x16xbf16>, vector<8x16xbf16>, vector<16x16xf32> -> vector<16x16xf32>
    %106 = arith.addf %105, %58 : vector<16x16xf32>
    %cst_31 = arith.constant dense<0xFF800000> : vector<16xf32>
    %107 = vector.multi_reduction <maximumf>, %106, %cst_31 [1] : vector<16x16xf32> to vector<16xf32>
    %108 = vector.shape_cast %107 : vector<16xf32> to vector<16x1xf32>
    %109 = vector.broadcast %108 : vector<16x1xf32> to vector<16x16xf32>
    %110 = arith.subf %106, %109 : vector<16x16xf32>
    %111 = math.exp %110 : vector<16x16xf32>
    %cst_32 = arith.constant dense<0.000000e+00> : vector<16xf32>
    %112 = vector.multi_reduction <add>, %111, %cst_32 [1] : vector<16x16xf32> to vector<16xf32>
    %113 = vector.shape_cast %112 : vector<16xf32> to vector<16x1xf32>
    %114 = tpu.reciprocal %113 : vector<16x1xf32> -> vector<16x1xf32>
    %115 = vector.broadcast %114 : vector<16x1xf32> to vector<16x16xf32>
    %116 = arith.mulf %111, %115 : vector<16x16xf32>
    %117 = arith.truncf %116 : vector<16x16xf32> to vector<16x16xbf16>
    %cst_33 = arith.constant dense<0.000000e+00> : vector<16x8xf32>
    %118 = tpu.matmul %117, %104, %cst_33 {dimension_numbers = #tpu.dot_dimension_numbers<[1], [1], [0], [0], [0, 0, 1, 0], [], []>} : vector<16x16xbf16>, vector<8x16xbf16>, vector<16x8xf32> -> vector<16x8xf32>
    %119 = arith.truncf %118 : vector<16x8xf32> to vector<16x8xbf16>
    %120 = vector.extract_strided_slice %26 {offsets = [16, 0], sizes = [8, 128], strides = [1, 1]} : vector<32x128xbf16> to vector<8x128xbf16>
    %cst_34 = arith.constant dense<0.000000e+00> : vector<16x128xf32>
    %121 = tpu.matmul %119, %120, %cst_34 {dimension_numbers = #tpu.dot_dimension_numbers<[1], [0], [0], [1], [0, 0, 1, 1], [], []>} : vector<16x8xbf16>, vector<8x128xbf16>, vector<16x128xf32> -> vector<16x128xf32>
    %122 = arith.addf %101, %121 : vector<16x128xf32>
    %123 = vector.extract_strided_slice %23 {offsets = [24, 0], sizes = [8, 16], strides = [1, 1]} : vector<32x16xbf16> to vector<8x16xbf16>
    %124 = vector.extract_strided_slice %24 {offsets = [24, 0], sizes = [8, 16], strides = [1, 1]} : vector<32x16xbf16> to vector<8x16xbf16>
    %125 = vector.extract_strided_slice %25 {offsets = [24, 0], sizes = [8, 16], strides = [1, 1]} : vector<32x16xbf16> to vector<8x16xbf16>
    %cst_35 = arith.constant dense<0.000000e+00> : vector<16x16xf32>
    %126 = tpu.matmul %123, %124, %cst_35 {dimension_numbers = #tpu.dot_dimension_numbers<[0], [0], [1], [1], [0, 1, 1, 1], [], []>} : vector<8x16xbf16>, vector<8x16xbf16>, vector<16x16xf32> -> vector<16x16xf32>
    %127 = arith.addf %126, %58 : vector<16x16xf32>
    %cst_36 = arith.constant dense<0xFF800000> : vector<16xf32>
    %128 = vector.multi_reduction <maximumf>, %127, %cst_36 [1] : vector<16x16xf32> to vector<16xf32>
    %129 = vector.shape_cast %128 : vector<16xf32> to vector<16x1xf32>
    %130 = vector.broadcast %129 : vector<16x1xf32> to vector<16x16xf32>
    %131 = arith.subf %127, %130 : vector<16x16xf32>
    %132 = math.exp %131 : vector<16x16xf32>
    %cst_37 = arith.constant dense<0.000000e+00> : vector<16xf32>
    %133 = vector.multi_reduction <add>, %132, %cst_37 [1] : vector<16x16xf32> to vector<16xf32>
    %134 = vector.shape_cast %133 : vector<16xf32> to vector<16x1xf32>
    %135 = tpu.reciprocal %134 : vector<16x1xf32> -> vector<16x1xf32>
    %136 = vector.broadcast %135 : vector<16x1xf32> to vector<16x16xf32>
    %137 = arith.mulf %132, %136 : vector<16x16xf32>
    %138 = arith.truncf %137 : vector<16x16xf32> to vector<16x16xbf16>
    %cst_38 = arith.constant dense<0.000000e+00> : vector<16x8xf32>
    %139 = tpu.matmul %138, %125, %cst_38 {dimension_numbers = #tpu.dot_dimension_numbers<[1], [1], [0], [0], [0, 0, 1, 0], [], []>} : vector<16x16xbf16>, vector<8x16xbf16>, vector<16x8xf32> -> vector<16x8xf32>
    %140 = arith.truncf %139 : vector<16x8xf32> to vector<16x8xbf16>
    %141 = vector.extract_strided_slice %26 {offsets = [24, 0], sizes = [8, 128], strides = [1, 1]} : vector<32x128xbf16> to vector<8x128xbf16>
    %cst_39 = arith.constant dense<0.000000e+00> : vector<16x128xf32>
    %142 = tpu.matmul %140, %141, %cst_39 {dimension_numbers = #tpu.dot_dimension_numbers<[1], [0], [0], [1], [0, 0, 1, 1], [], []>} : vector<16x8xbf16>, vector<8x128xbf16>, vector<16x128xf32> -> vector<16x128xf32>
    %143 = arith.addf %122, %142 : vector<16x128xf32>
    %c0_40 = arith.constant 0 : index
    %c0_41 = arith.constant 0 : index
    %144 = vector.load %arg5[%c0_40, %c0_41] : memref<1x128xf32, #tpu.memory_space<vmem>>, vector<1x128xf32>
    %145 = vector.broadcast %144 : vector<1x128xf32> to vector<16x128xf32>
    %146 = arith.addf %143, %145 : vector<16x128xf32>
    %c0_42 = arith.constant 0 : index
    %c0_43 = arith.constant 0 : index
    %c0_44 = arith.constant 0 : index
    %147 = vector.load %arg8[%c0_42, %c0_43, %c0_44] : memref<1x16x128xf32, #tpu.memory_space<vmem>>, vector<1x16x128xf32>
    %148 = vector.shape_cast %147 : vector<1x16x128xf32> to vector<16x128xf32>
    %149 = vector.shape_cast %146 : vector<16x128xf32> to vector<1x16x128xf32>
    tpu.vector_store %arg8[%c0_42, %c0_43, %c0_44], %149 {strides = array<i32>} : memref<1x16x128xf32, #tpu.memory_space<vmem>>, vector<1x16x128xf32>,
    return
  }
  func.func @transform_0(%arg0: i32) -> (i32, i32, i32) {
    %c0_i32 = arith.constant 0 : i32
    %c0_i32_0 = arith.constant 0 : i32
    %c0_i32_1 = arith.constant 0 : i32
    return %arg0, %c0_i32, %c0_i32_0 : i32, i32, i32
  }
  func.func @transform_1(%arg0: i32) -> (i32, i32) {
    %c0_i32 = arith.constant 0 : i32
    %c0_i32_0 = arith.constant 0 : i32
    %c0_i32_1 = arith.constant 0 : i32
    return %c0_i32, %c0_i32_0 : i32, i32
  }
  func.func @transform_2(%arg0: i32) -> (i32, i32) {
    %c0_i32 = arith.constant 0 : i32
    %c0_i32_0 = arith.constant 0 : i32
    %c0_i32_1 = arith.constant 0 : i32
    return %c0_i32, %c0_i32_0 : i32, i32
  }
  func.func @transform_3(%arg0: i32) -> (i32, i32) {
    %c0_i32 = arith.constant 0 : i32
    %c0_i32_0 = arith.constant 0 : i32
    %c0_i32_1 = arith.constant 0 : i32
    return %c0_i32, %c0_i32_0 : i32, i32
  }
  func.func @transform_4(%arg0: i32) -> (i32, i32) {
    %c0_i32 = arith.constant 0 : i32
    %c0_i32_0 = arith.constant 0 : i32
    %c0_i32_1 = arith.constant 0 : i32
    return %c0_i32, %c0_i32_0 : i32, i32
  }
  func.func @transform_5(%arg0: i32) -> (i32, i32) {
    %c0_i32 = arith.constant 0 : i32
    %c0_i32_0 = arith.constant 0 : i32
    %c0_i32_1 = arith.constant 0 : i32
    return %c0_i32, %c0_i32_0 : i32, i32
  }
  func.func @transform_6(%arg0: i32) -> (i32, i32) {
    %c0_i32 = arith.constant 0 : i32
    %c0_i32_0 = arith.constant 0 : i32
    %c0_i32_1 = arith.constant 0 : i32
    return %c0_i32, %c0_i32_0 : i32, i32
  }
  func.func @transform_7(%arg0: i32) -> (i32, i32, i32) {
    %c0_i32 = arith.constant 0 : i32
    %c0_i32_0 = arith.constant 0 : i32
    %c0_i32_1 = arith.constant 0 : i32
    return %arg0, %c0_i32, %c0_i32_0 : i32, i32, i32
  }
}

</mosaic_0001>

<llo_original>
// kernel: tpu_custom_call.1
$region0: #{tpu_custom_call.1}
  #allocation0 [shape = 'u32[]', space=smem, size = 0x4, offset = 0x4, fixed_abs, tag = 'smem constant byte address 0x4 - core index']
  #allocation1 [shape = 'u32[72,128]{1,0:T(1,128)}', space=vmem, size = 0x9000, scoped, tag = 'internal scratch']
  %s0 = inlined_call_operand.vmem [shape: f32[1,32,16], index: 0, kind: input, shape index: {}]
  %s1 = inlined_call_operand.vmem [shape: bf16[160,32], index: 1, kind: input, shape index: {}]
  %s2 = inlined_call_operand.vmem [shape: f32[160,1], index: 2, kind: input, shape index: {}]
  %s3 = inlined_call_operand.vmem [shape: bf16[32,128], index: 3, kind: input, shape index: {}]
  %s4 = inlined_call_operand.vmem [shape: f32[1,128], index: 4, kind: input, shape index: {}]
  %s5 = inlined_call_operand.vmem [shape: f32[8,16], index: 5, kind: input, shape index: {}]
  %s6 = inlined_call_operand.vmem [shape: f32[8,16], index: 6, kind: input, shape index: {}]
  %s7 = inlined_call_operand.hbm [shape: f32[1,16,128], index: 7, kind: output, shape index: {}]
  %s8 = sld [smem:[#allocation0]]
  $region38: #{tpu_custom_call.1} parent=0
    _
  %s10 = ssub.s32 1, %s8
  %s11 = scalar_select 0, %s10, %s8
  $region1: #{tpu_custom_call.1} parent=0
    #allocation2 [shape = 'u8[8192]{0}', space=vmem, size = 0x2000, scoped, tag = 'output window, operand 0, single buffered']
    #allocation3 [shape = 's32[1]{0}', space=sflag, size = 0x4, scoped, tag = 'scoped memory for tpu_custom_call.1']
    %12 = vsyncpa [#allocation3], 0
    // Predicated region
    $region2: #{tpu_custom_call.1} parent=1 // pred_check
      _
    $region3: #{tpu_custom_call.1} parent=1 // pred_check_branch
      %14 = sbr.rel (0) target = $region5
    $region4: #{tpu_custom_call.1} parent=1 // pred_region
      _
    $region5: #{tpu_custom_call.1} parent=1 // pred_fallthru
      _
    // Predicated region
    $region6: #{tpu_custom_call.1} parent=1 // pred_check
      _
    $region7: #{tpu_custom_call.1} parent=1 // pred_check_branch
      %16 = sbr.rel (0) target = $region9
    $region8: #{tpu_custom_call.1} parent=1 // pred_region
      _
    $region9: #{tpu_custom_call.1} parent=1 // pred_fallthru
      _
    // Predicated region
    $region10: #{tpu_custom_call.1} parent=1 // pred_check
      _
    $region11: #{tpu_custom_call.1} parent=1 // pred_check_branch
      %18 = sbr.rel (0) target = $region13
    $region12: #{tpu_custom_call.1} parent=1 // pred_region
      _
    $region13: #{tpu_custom_call.1} parent=1 // pred_fallthru
      _
    // Predicated region
    $region14: #{tpu_custom_call.1} parent=1 // pred_check
      _
    $region15: #{tpu_custom_call.1} parent=1 // pred_check_branch
      %20 = sbr.rel (0) target = $region17
    $region16: #{tpu_custom_call.1} parent=1 // pred_region
      _
    $region17: #{tpu_custom_call.1} parent=1 // pred_fallthru
      _
    // Predicated region
    $region18: #{tpu_custom_call.1} parent=1 // pred_check
      _
    $region19: #{tpu_custom_call.1} parent=1 // pred_check_branch
      %22 = sbr.rel (0) target = $region21
    $region20: #{tpu_custom_call.1} parent=1 // pred_region
      _
    $region21: #{tpu_custom_call.1} parent=1 // pred_fallthru
      _
    // Predicated region
    $region22: #{tpu_custom_call.1} parent=1 // pred_check
      _
    $region23: #{tpu_custom_call.1} parent=1 // pred_check_branch
      %24 = sbr.rel (0) target = $region25
    $region24: #{tpu_custom_call.1} parent=1 // pred_region
      _
    $region25: #{tpu_custom_call.1} parent=1 // pred_fallthru
      _
    // Predicated region
    $region26: #{tpu_custom_call.1} parent=1 // pred_check
      _
    $region27: #{tpu_custom_call.1} parent=1 // pred_check_branch
      %26 = sbr.rel (0) target = $region29
    $region28: #{tpu_custom_call.1} parent=1 // pred_region
      _
    $region29: #{tpu_custom_call.1} parent=1 // pred_fallthru
      _
    %v28 = vld [vmem:[%s0] sm:$0xff]
    %v29 = vld [vmem:[%s0 + $0x8] sm:$0xff]
    %v30 = vld [vmem:[%s0 + $0x10] sm:$0xff]
    %v31 = vld [vmem:[%s0 + $0x18] sm:$0xff]
    %v32 = vpack.c.bf16 %v29, %v28
    %v33 = vpack.c.bf16 %v31, %v30
    %v34 = vld [vmem:[%s1] sm:$0xf]
    %v35 = vld [vmem:[%s1 + $0x4] sm:$0xf]
    %v36 = vld [vmem:[%s1 + $0x8] sm:$0xf]
    %v37 = vld [vmem:[%s1 + $0xc] sm:$0xf]
    %v38 = vld [vmem:[%s1 + $0x10] sm:$0xf]
    %v39 = vld [vmem:[%s1 + $0x14] sm:$0xf]
    %v40 = vld [vmem:[%s1 + $0x18] sm:$0xf]
    %v41 = vld [vmem:[%s1 + $0x1c] sm:$0xf]
    %v42 = vld [vmem:[%s1 + $0x20] sm:$0xf]
    %v43 = vld [vmem:[%s1 + $0x24] sm:$0xf]
    %v44 = vld [vmem:[%s1 + $0x28] sm:$0xf]
    %v45 = vld [vmem:[%s1 + $0x2c] sm:$0xf]
    %v46 = vld [vmem:[%s1 + $0x30] sm:$0xf]
    %v47 = vld [vmem:[%s1 + $0x34] sm:$0xf]
    %v48 = vld [vmem:[%s1 + $0x38] sm:$0xf]
    %v49 = vld [vmem:[%s1 + $0x3c] sm:$0xf]
    %v50 = vld [vmem:[%s1 + $0x40] sm:$0xf]
    %v51 = vld [vmem:[%s1 + $0x44] sm:$0xf]
    %v52 = vld [vmem:[%s1 + $0x48] sm:$0xf]
    %v53 = vld [vmem:[%s1 + $0x4c] sm:$0xf]
    %v54 = vld [vmem:[%s2] sm:$0xff]
    %v55 = vld [vmem:[%s2 + $0x8] sm:$0xff]
    %v56 = vld [vmem:[%s2 + $0x10] sm:$0xff]
    %v57 = vld [vmem:[%s2 + $0x18] sm:$0xff]
    %v58 = vld [vmem:[%s2 + $0x20] sm:$0xff]
    %v59 = vld [vmem:[%s2 + $0x28] sm:$0xff]
    %v60 = vld [vmem:[%s2 + $0x30] sm:$0xff]
    %v61 = vld [vmem:[%s2 + $0x38] sm:$0xff]
    %v62 = vld [vmem:[%s2 + $0x40] sm:$0xff]
    %v63 = vld [vmem:[%s2 + $0x48] sm:$0xff]
    %v64 = vld [vmem:[%s2 + $0x50] sm:$0xff]
    %v65 = vld [vmem:[%s2 + $0x58] sm:$0xff]
    %v66 = vld [vmem:[%s2 + $0x60] sm:$0xff]
    %v67 = vld [vmem:[%s2 + $0x68] sm:$0xff]
    %v68 = vld [vmem:[%s2 + $0x70] sm:$0xff]
    %v69 = vld [vmem:[%s2 + $0x78] sm:$0xff]
    %v70 = vld [vmem:[%s2 + $0x80] sm:$0xff]
    %v71 = vld [vmem:[%s2 + $0x88] sm:$0xff]
    %v72 = vld [vmem:[%s2 + $0x90] sm:$0xff]
    %v73 = vld [vmem:[%s2 + $0x98] sm:$0xff]
    %75 = vset.pattern.permute.xlu0 0
    %76 = vperm.xlu0 %75, %v54
    %v77 = vpop.permute.xlu0 %76
    %80 = vset.pattern.permute.xlu0 0
    %81 = vperm.xlu0 %80, %v55
    %v82 = vpop.permute.xlu0 %81
    %85 = vset.pattern.permute.xlu0 0
    %86 = vperm.xlu0 %85, %v56
    %v87 = vpop.permute.xlu0 %86
    %90 = vset.pattern.permute.xlu0 0
    %91 = vperm.xlu0 %90, %v57
    %v92 = vpop.permute.xlu0 %91
    %95 = vset.pattern.permute.xlu0 0
    %96 = vperm.xlu0 %95, %v58
    %v97 = vpop.permute.xlu0 %96
    %100 = vset.pattern.permute.xlu0 0
    %101 = vperm.xlu0 %100, %v59
    %v102 = vpop.permute.xlu0 %101
    %105 = vset.pattern.permute.xlu0 0
    %106 = vperm.xlu0 %105, %v60
    %v107 = vpop.permute.xlu0 %106
    %110 = vset.pattern.permute.xlu0 0
    %111 = vperm.xlu0 %110, %v61
    %v112 = vpop.permute.xlu0 %111
    %115 = vset.pattern.permute.xlu0 0
    %116 = vperm.xlu0 %115, %v62
    %v117 = vpop.permute.xlu0 %116
    %120 = vset.pattern.permute.xlu0 0
    %121 = vperm.xlu0 %120, %v63
    %v122 = vpop.permute.xlu0 %121
    %125 = vset.pattern.permute.xlu0 0
    %126 = vperm.xlu0 %125, %v64
    %v127 = vpop.permute.xlu0 %126
    %130 = vset.pattern.permute.xlu0 0
    %131 = vperm.xlu0 %130, %v65
    %v132 = vpop.permute.xlu0 %131
    %135 = vset.pattern.permute.xlu0 0
    %136 = vperm.xlu0 %135, %v66
    %v137 = vpop.permute.xlu0 %136
    %140 = vset.pattern.permute.xlu0 0
    %141 = vperm.xlu0 %140, %v67
    %v142 = vpop.permute.xlu0 %141
    %145 = vset.pattern.permute.xlu0 0
    %146 = vperm.xlu0 %145, %v68
    %v147 = vpop.permute.xlu0 %146
    %150 = vset.pattern.permute.xlu0 0
    %151 = vperm.xlu0 %150, %v69
    %v152 = vpop.permute.xlu0 %151
    %155 = vset.pattern.permute.xlu0 0
    %156 = vperm.xlu0 %155, %v70
    %v157 = vpop.permute.xlu0 %156
    %160 = vset.pattern.permute.xlu0 0
    %161 = vperm.xlu0 %160, %v71
    %v162 = vpop.permute.xlu0 %161
    %165 = vset.pattern.permute.xlu0 0
    %166 = vperm.xlu0 %165, %v72
    %v167 = vpop.permute.xlu0 %166
    %170 = vset.pattern.permute.xlu0 0
    %171 = vperm.xlu0 %170, %v73
    %v172 = vpop.permute.xlu0 %171
    %v194 = vunpack.c.l.b16 %v34
    %v195 = vunpack.c.l.b16 %v35
    %v196 = vunpack.c.l.b16 %v36
    %v197 = vunpack.c.l.b16 %v37
    %v198 = vunpack.c.l.b16 %v38
    %v199 = vunpack.c.l.b16 %v39
    %v200 = vunpack.c.l.b16 %v40
    %v201 = vunpack.c.l.b16 %v41
    %v202 = vunpack.c.l.b16 %v42
    %v203 = vunpack.c.l.b16 %v43
    %v204 = vunpack.c.l.b16 %v44
    %v205 = vunpack.c.l.b16 %v45
    %v206 = vunpack.c.l.b16 %v46
    %v207 = vunpack.c.l.b16 %v47
    %v208 = vunpack.c.l.b16 %v48
    %v209 = vunpack.c.l.b16 %v49
    %v210 = vunpack.c.l.b16 %v50
    %v211 = vunpack.c.l.b16 %v51
    %v212 = vunpack.c.l.b16 %v52
    %v213 = vunpack.c.l.b16 %v53
    %v214 = vpack.c.b16 %v195, %v194
    %v215 = vpack.c.b16 %v197, %v196
    %v216 = vpack.c.b16 %v199, %v198
    %v217 = vpack.c.b16 %v201, %v200
    %v218 = vpack.c.b16 %v203, %v202
    %v219 = vpack.c.b16 %v205, %v204
    %v220 = vpack.c.b16 %v207, %v206
    %v221 = vpack.c.b16 %v209, %v208
    %v222 = vpack.c.b16 %v211, %v210
    %v223 = vpack.c.b16 %v213, %v212
    %vm224 = vcmask 261120
    %v226 = vsel %vm224, %v214, 0
    %v229 = vsel %vm224, %v215, 0
    %v232 = vsel %vm224, %v216, 0
    %v235 = vsel %vm224, %v217, 0
    %v238 = vsel %vm224, %v218, 0
    %v241 = vsel %vm224, %v219, 0
    %v244 = vsel %vm224, %v220, 0
    %v247 = vsel %vm224, %v221, 0
    %v250 = vsel %vm224, %v222, 0
    %v253 = vsel %vm224, %v223, 0
    %255 = vmatpush.bf16.msra.mxu0 0
    %256 = vmatpush.bf16.msra.mxu0 0
    %257 = vmatpush.bf16.msra.mxu0 0
    %258 = vmatpush.bf16.msra.mxu0 0
    %259 = vmatpush.bf16.msra.mxu0 0
    %260 = vmatpush.bf16.msra.mxu0 0
    %261 = vmatpush.bf16.msra.mxu0 %v33
    %262 = vmatpush.bf16.msra.mxu0 %v32
    %263 = vmatmul.bf16.gmra.mxu0 %v226
    %v264 = vpop.f32.mrf.mxu0
    %v265 = vadd.f32 %v77, %v264
    %v266 = vpop.f32.mrf.mxu0
    %v267 = vadd.f32 %v82, %v266
    %268 = vmatmul.bf16.gmra.mxu0 %v229
    %v269 = vpop.f32.mrf.mxu0
    %v270 = vadd.f32 %v87, %v269
    %v271 = vpop.f32.mrf.mxu0
    %v272 = vadd.f32 %v92, %v271
    %273 = vmatmul.bf16.gmra.mxu0 %v232
    %v274 = vpop.f32.mrf.mxu0
    %v275 = vadd.f32 %v97, %v274
    %v276 = vpop.f32.mrf.mxu0
    %v277 = vadd.f32 %v102, %v276
    %278 = vmatmul.bf16.gmra.mxu0 %v235
    %v279 = vpop.f32.mrf.mxu0
    %v280 = vadd.f32 %v107, %v279
    %v281 = vpop.f32.mrf.mxu0
    %v282 = vadd.f32 %v112, %v281
    %283 = vmatmul.bf16.gmra.mxu0 %v238
    %v284 = vpop.f32.mrf.mxu0
    %v285 = vadd.f32 %v117, %v284
    %v286 = vpop.f32.mrf.mxu0
    %v287 = vadd.f32 %v122, %v286
    %288 = vmatmul.bf16.gmra.mxu0 %v241
    %v289 = vpop.f32.mrf.mxu0
    %v290 = vadd.f32 %v127, %v289
    %v291 = vpop.f32.mrf.mxu0
    %v292 = vadd.f32 %v132, %v291
    %293 = vmatmul.bf16.gmra.mxu0 %v244
    %v294 = vpop.f32.mrf.mxu0
    %v295 = vadd.f32 %v137, %v294
    %v296 = vpop.f32.mrf.mxu0
    %v297 = vadd.f32 %v142, %v296
    %298 = vmatmul.bf16.gmra.mxu0 %v247
    %v299 = vpop.f32.mrf.mxu0
    %v300 = vadd.f32 %v147, %v299
    %v301 = vpop.f32.mrf.mxu0
    %v302 = vadd.f32 %v152, %v301
    %303 = vmatmul.bf16.gmra.mxu0 %v250
    %v304 = vpop.f32.mrf.mxu0
    %v305 = vadd.f32 %v157, %v304
    %v306 = vpop.f32.mrf.mxu0
    %v307 = vadd.f32 %v162, %v306
    %308 = vmatmul.bf16.gmra.mxu0 %v253
    %v309 = vpop.f32.mrf.mxu0
    %v310 = vadd.f32 %v167, %v309
    %v311 = vpop.f32.mrf.mxu0
    %v312 = vadd.f32 %v172, %v311
    %313 = vdwg.mxu0
    %v314 = vld [vmem:[%s5] sm:$0xff]
    %v315 = vld [vmem:[%s6] sm:$0xff]
    %v316 = vmul.f32 %v265, %v314
    %v317 = vmul.f32 %v267, %v314
    %v318 = vmul.f32 %v270, %v314
    %v319 = vmul.f32 %v272, %v314
    %v320 = vmul.f32 %v295, %v315
    %v321 = vmul.f32 %v297, %v315
    %v322 = vmul.f32 %v300, %v315
    %v323 = vmul.f32 %v302, %v315
    %v324 = vadd.f32 %v316, %v320
    %v325 = vadd.f32 %v317, %v321
    %v326 = vadd.f32 %v318, %v322
    %v327 = vadd.f32 %v319, %v323
    %v328 = vmul.f32 %v275, %v314
    %v329 = vmul.f32 %v277, %v314
    %v330 = vmul.f32 %v280, %v314
    %v331 = vmul.f32 %v282, %v314
    %v332 = vmul.f32 %v305, %v315
    %v333 = vmul.f32 %v307, %v315
    %v334 = vmul.f32 %v310, %v315
    %v335 = vmul.f32 %v312, %v315
    %v336 = vadd.f32 %v328, %v332
    %v337 = vadd.f32 %v329, %v333
    %v338 = vadd.f32 %v330, %v334
    %v339 = vadd.f32 %v331, %v335
    %v340 = vpack.c.bf16 %v324, %v324
    %v341 = vpack.c.bf16 %v325, %v325
    %v342 = vpack.c.bf16 %v326, %v326
    %v343 = vpack.c.bf16 %v327, %v327
    %v344 = vpack.c.bf16 %v336, %v336
    %v345 = vpack.c.bf16 %v337, %v337
    %v346 = vpack.c.bf16 %v338, %v338
    %v347 = vpack.c.bf16 %v339, %v339
    %v348 = vpack.c.bf16 %v285, %v285
    %v349 = vpack.c.bf16 %v287, %v287
    %v350 = vpack.c.bf16 %v290, %v290
    %v351 = vpack.c.bf16 %v292, %v292
    %v352 = vld [vmem:[%s3] sm:$0xf]
    %v353 = vld [vmem:[%s3 + $0x4] sm:$0xf]
    %v354 = vld [vmem:[%s3 + $0x8] sm:$0xf]
    %v355 = vld [vmem:[%s3 + $0xc] sm:$0xf]
    %v356 = vlaneseq
    %v357 = vshrl.u32 %v356, 7
    %v358 = vadd.s32 %v357, 8
    %v359 = vlaneseq
    %v360 = vand.u32 %v359, 127
    %vm361 = vcmp.ge.s32.totalorder %v357, 0
    %vm362 = vcmp.ge.s32.totalorder %v358, 0
    %vm363 = vcmp.lt.s32.totalorder %v357, 8
    %vm364 = vcmp.lt.s32.totalorder %v358, 8
    %vm365 = vmand %vm361, %vm363
    %vm366 = vmand %vm362, %vm364
    %vm367 = vcmp.ge.s32.totalorder %v360, 0
    %vm368 = vmand %vm365, %vm367
    %vm369 = vmand %vm366, %vm367
    %vm370 = vcmp.lt.s32.totalorder %v360, 8
    %vm371 = vmand %vm368, %vm370
    %vm372 = vmand %vm369, %vm370
    %vm373 = vcmp.ge.s32.totalorder %v357, 8
    %vm374 = vcmp.ge.s32.totalorder %v358, 8
    %vm375 = vcmp.lt.s32.totalorder %v357, 16
    %vm376 = vcmp.lt.s32.totalorder %v358, 16
    %vm377 = vmand %vm373, %vm375
    %vm378 = vmand %vm374, %vm376
    %vm379 = vcmp.ge.s32.totalorder %v360, 8
    %vm380 = vmand %vm377, %vm379
    %vm381 = vmand %vm378, %vm379
    %vm382 = vcmp.lt.s32.totalorder %v360, 16
    %vm383 = vmand %vm380, %vm382
    %vm384 = vmand %vm381, %vm382
    %vm385 = vmor %vm371, %vm383
    %vm386 = vmor %vm372, %vm384
    %vm387 = vcmp.ge.s32.totalorder %v357, %v360
    %vm388 = vcmp.ge.s32.totalorder %v358, %v360
    %vm389 = vmand %vm387, %vm385
    %vm390 = vmand %vm388, %vm386
    %v391 = vsel %vm389, 0.0, -1e+30
    %v392 = vsel %vm390, 0.0, -1e+30
    %393 = vxpose.xlu0.c.b16.start [1/8] %v340, 128
    %394 = vxpose.xlu0.c.b16.cont [2/8] 0, 128
    %395 = vxpose.xlu0.c.b16.cont [3/8] 0, 128
    %396 = vxpose.xlu0.c.b16.cont [4/8] 0, 128
    %397 = vxpose.xlu0.c.b16.cont [5/8] 0, 128
    %398 = vxpose.xlu0.c.b16.cont [6/8] 0, 128
    %399 = vxpose.xlu0.c.b16.cont [7/8] 0, 128
    %400 = vxpose.xlu0.c.b16.end [8/8] 0, 128
    %v401 = vpop.trf.xlu0
    %v402 = vpop.trf.xlu0
    %v403 = vpop.trf.xlu0
    %v404 = vpop.trf.xlu0
    %v405 = vpop.trf.xlu0
    %v406 = vpop.trf.xlu0
    %v407 = vpop.trf.xlu0
    %v408 = vpop.trf.xlu0
    %vm409 = vcmask 64512
    %v411 = vsel %vm409, %v401, 0
    %vm413 = vcmask 1043456
    %v415 = vsel %vm413, %v344, 0
    %417 = vmatpush.bf16.msra.mxu0 0
    %418 = vmatpush.bf16.msra.mxu0 0
    %419 = vmatpush.bf16.msra.mxu0 0
    %420 = vmatpush.bf16.msra.mxu0 0
    %421 = vmatpush.bf16.msra.mxu0 0
    %422 = vmatpush.bf16.msra.mxu0 0
    %423 = vmatpush.bf16.msra.mxu0 0
    %424 = vmatpush.bf16.msra.mxu0 %v415
    %425 = vmatmul.bf16.gmra.mxu0 %v411
    %v426 = vpop.f32.mrf.mxu0
    %v427 = vadd.f32 %v391, %v426
    %v428 = vpop.f32.mrf.mxu0
    %v429 = vadd.f32 %v392, %v428
    %430 = vdwg.mxu0
    %vm431 = vcmask 130048
    %v432 = vsel %vm431, %v427, -inf
    %433 = vmax.xlane.f32.xlu0 %v432
    %v434 = vpop.xlane.xlu0 %433
    %v435 = vsel %vm431, %v429, -inf
    %436 = vmax.xlane.f32.xlu0 %v435
    %v437 = vpop.xlane.xlu0 %436
    %v438 = vsub.f32 %v427, %v434
    %v439 = vsub.f32 %v429, %v437
    %v440 = vmul.f32 %v438, 1.442695
    %v441 = vpow.pop %v440
    %v442 = vmul.f32 %v439, 1.442695
    %v443 = vpow.pop %v442
    %v444 = vsel %vm431, %v441, 0.0
    %445 = vadd.xlane.f32.xlu0 %v444
    %v446 = vpop.xlane.xlu0 %445
    %v447 = vsel %vm431, %v443, 0.0
    %448 = vadd.xlane.f32.xlu0 %v447
    %v449 = vpop.xlane.xlu0 %448
    %v450 = vrcp.pop %v446
    %v451 = vmul.f32 %v446, %v450
    %v452 = vsub.f32 1.0, %v451
    %v453 = vmul.f32 %v450, %v452
    %v454 = vadd.f32 %v450, %v453
    %vm455 = vweird.f32 %v446
    %vm456 = vweird.f32 %v450
    %vm457 = vmor %vm455, %vm456
    %v458 = vsel %vm457, %v450, %v454
    %v459 = vand.u32 2147483647, %v446
    %vm460 = vcmp.eq.f32.partialorder %v459, 8.507059e+37
    %v461 = vand.u32 %v446, 2147483648
    %v462 = vor.u32 1.1754944e-38, %v461
    %v463 = vsel %vm460, %v462, %v458
    %v464 = vrcp.pop %v449
    %v465 = vmul.f32 %v449, %v464
    %v466 = vsub.f32 1.0, %v465
    %v467 = vmul.f32 %v464, %v466
    %v468 = vadd.f32 %v464, %v467
    %vm469 = vweird.f32 %v449
    %vm470 = vweird.f32 %v464
    %vm471 = vmor %vm469, %vm470
    %v472 = vsel %vm471, %v464, %v468
    %v473 = vand.u32 2147483647, %v449
    %vm474 = vcmp.eq.f32.partialorder %v473, 8.507059e+37
    %v475 = vand.u32 %v449, 2147483648
    %v476 = vor.u32 1.1754944e-38, %v475
    %v477 = vsel %vm474, %v476, %v472
    %v478 = vmul.f32 %v441, %v463
    %v479 = vmul.f32 %v443, %v477
    %v480 = vpack.c.bf16 %v479, %v478
    %v482 = vsel %vm431, %v480, 0
    %v485 = vsel %vm431, %v348, 0
    %487 = vmatpush.bf16.xpose.msra.mxu0 0
    %488 = vmatpush.bf16.xpose.msra.mxu0 0
    %489 = vmatpush.bf16.xpose.msra.mxu0 0
    %490 = vmatpush.bf16.xpose.msra.mxu0 0
    %491 = vmatpush.bf16.xpose.msra.mxu0 0
    %492 = vmatpush.bf16.xpose.msra.mxu0 0
    %493 = vmatpush.bf16.xpose.msra.mxu0 0
    %494 = vmatpush.bf16.xpose.msra.mxu0 %v485
    %495 = vmatmul.bf16.gmra.mxu0 %v482
    %v496 = vpop.f32.mrf.mxu0
    %v497 = vadd.f32 0.0, %v496
    %v498 = vpop.f32.mrf.mxu0
    %v499 = vadd.f32 0.0, %v498
    %500 = vdwg.mxu0
    %v501 = vpack.c.bf16 %v499, %v497
    %502 = vxpose.xlu0.c.b16.start [1/8] %v341, 128
    %503 = vxpose.xlu0.c.b16.cont [2/8] 0, 128
    %504 = vxpose.xlu0.c.b16.cont [3/8] 0, 128
    %505 = vxpose.xlu0.c.b16.cont [4/8] 0, 128
    %506 = vxpose.xlu0.c.b16.cont [5/8] 0, 128
    %507 = vxpose.xlu0.c.b16.cont [6/8] 0, 128
    %508 = vxpose.xlu0.c.b16.cont [7/8] 0, 128
    %509 = vxpose.xlu0.c.b16.end [8/8] 0, 128
    %v510 = vpop.trf.xlu0
    %v511 = vpop.trf.xlu0
    %v512 = vpop.trf.xlu0
    %v513 = vpop.trf.xlu0
    %v514 = vpop.trf.xlu0
    %v515 = vpop.trf.xlu0
    %v516 = vpop.trf.xlu0
    %v517 = vpop.trf.xlu0
    %v519 = vsel %vm409, %v510, 0
    %v522 = vsel %vm413, %v345, 0
    %524 = vmatpush.bf16.msra.mxu0 0
    %525 = vmatpush.bf16.msra.mxu0 0
    %526 = vmatpush.bf16.msra.mxu0 0
    %527 = vmatpush.bf16.msra.mxu0 0
    %528 = vmatpush.bf16.msra.mxu0 0
    %529 = vmatpush.bf16.msra.mxu0 0
    %530 = vmatpush.bf16.msra.mxu0 0
    %531 = vmatpush.bf16.msra.mxu0 %v522
    %532 = vmatmul.bf16.gmra.mxu0 %v519
    %v533 = vpop.f32.mrf.mxu0
    %v534 = vadd.f32 %v391, %v533
    %v535 = vpop.f32.mrf.mxu0
    %v536 = vadd.f32 %v392, %v535
    %537 = vdwg.mxu0
    %v538 = vsel %vm431, %v534, -inf
    %539 = vmax.xlane.f32.xlu0 %v538
    %v540 = vpop.xlane.xlu0 %539
    %v541 = vsel %vm431, %v536, -inf
    %542 = vmax.xlane.f32.xlu0 %v541
    %v543 = vpop.xlane.xlu0 %542
    %v544 = vsub.f32 %v534, %v540
    %v545 = vsub.f32 %v536, %v543
    %v546 = vmul.f32 %v544, 1.442695
    %v547 = vpow.pop %v546
    %v548 = vmul.f32 %v545, 1.442695
    %v549 = vpow.pop %v548
    %v550 = vsel %vm431, %v547, 0.0
    %551 = vadd.xlane.f32.xlu0 %v550
    %v552 = vpop.xlane.xlu0 %551
    %v553 = vsel %vm431, %v549, 0.0
    %554 = vadd.xlane.f32.xlu0 %v553
    %v555 = vpop.xlane.xlu0 %554
    %v556 = vrcp.pop %v552
    %v557 = vmul.f32 %v552, %v556
    %v558 = vsub.f32 1.0, %v557
    %v559 = vmul.f32 %v556, %v558
    %v560 = vadd.f32 %v556, %v559
    %vm561 = vweird.f32 %v552
    %vm562 = vweird.f32 %v556
    %vm563 = vmor %vm561, %vm562
    %v564 = vsel %vm563, %v556, %v560
    %v565 = vand.u32 2147483647, %v552
    %vm566 = vcmp.eq.f32.partialorder %v565, 8.507059e+37
    %v567 = vand.u32 %v552, 2147483648
    %v568 = vor.u32 1.1754944e-38, %v567
    %v569 = vsel %vm566, %v568, %v564
    %v570 = vrcp.pop %v555
    %v571 = vmul.f32 %v555, %v570
    %v572 = vsub.f32 1.0, %v571
    %v573 = vmul.f32 %v570, %v572
    %v574 = vadd.f32 %v570, %v573
    %vm575 = vweird.f32 %v555
    %vm576 = vweird.f32 %v570
    %vm577 = vmor %vm575, %vm576
    %v578 = vsel %vm577, %v570, %v574
    %v579 = vand.u32 2147483647, %v555
    %vm580 = vcmp.eq.f32.partialorder %v579, 8.507059e+37
    %v581 = vand.u32 %v555, 2147483648
    %v582 = vor.u32 1.1754944e-38, %v581
    %v583 = vsel %vm580, %v582, %v578
    %v584 = vmul.f32 %v547, %v569
    %v585 = vmul.f32 %v549, %v583
    %v586 = vpack.c.bf16 %v585, %v584
    %v588 = vsel %vm431, %v586, 0
    %v591 = vsel %vm431, %v349, 0
    %593 = vmatpush.bf16.xpose.msra.mxu0 0
    %594 = vmatpush.bf16.xpose.msra.mxu0 0
    %595 = vmatpush.bf16.xpose.msra.mxu0 0
    %596 = vmatpush.bf16.xpose.msra.mxu0 0
    %597 = vmatpush.bf16.xpose.msra.mxu0 0
    %598 = vmatpush.bf16.xpose.msra.mxu0 0
    %599 = vmatpush.bf16.xpose.msra.mxu0 0
    %600 = vmatpush.bf16.xpose.msra.mxu0 %v591
    %601 = vmatmul.bf16.gmra.mxu0 %v588
    %v602 = vpop.f32.mrf.mxu0
    %v603 = vadd.f32 0.0, %v602
    %v604 = vpop.f32.mrf.mxu0
    %v605 = vadd.f32 0.0, %v604
    %606 = vdwg.mxu0
    %v607 = vpack.c.bf16 %v605, %v603
    %v609 = vsel %vm409, %v607, 0
    %v612 = vsel %vm413, %v353, 0
    %614 = vmatpush.bf16.msra.mxu0 0
    %615 = vmatpush.bf16.msra.mxu0 0
    %616 = vmatpush.bf16.msra.mxu0 0
    %617 = vmatpush.bf16.msra.mxu0 0
    %618 = vmatpush.bf16.msra.mxu0 0
    %619 = vmatpush.bf16.msra.mxu0 0
    %620 = vmatpush.bf16.msra.mxu0 0
    %621 = vmatpush.bf16.msra.mxu0 %v612
    %622 = vmatmul.bf16.gmra.mxu0 %v609
    %v623 = vpop.f32.mrf.mxu0
    %v624 = vadd.f32 0.0, %v623
    %v625 = vpop.f32.mrf.mxu0
    %v626 = vadd.f32 0.0, %v625
    %627 = vdwg.mxu0
    %v629 = vsel %vm409, %v501, 0
    %v632 = vsel %vm413, %v352, 0
    %634 = vmatpush.bf16.msra.mxu0 0
    %635 = vmatpush.bf16.msra.mxu0 0
    %636 = vmatpush.bf16.msra.mxu0 0
    %637 = vmatpush.bf16.msra.mxu0 0
    %638 = vmatpush.bf16.msra.mxu0 0
    %639 = vmatpush.bf16.msra.mxu0 0
    %640 = vmatpush.bf16.msra.mxu0 0
    %641 = vmatpush.bf16.msra.mxu0 %v632
    %642 = vmatmul.bf16.gmra.mxu0 %v629
    %v643 = vpop.f32.mrf.mxu0
    %v644 = vadd.f32 %v624, %v643
    %v645 = vpop.f32.mrf.mxu0
    %v646 = vadd.f32 %v626, %v645
    %647 = vdwg.mxu0
    %648 = vxpose.xlu0.c.b16.start [1/8] %v342, 128
    %649 = vxpose.xlu0.c.b16.cont [2/8] 0, 128
    %650 = vxpose.xlu0.c.b16.cont [3/8] 0, 128
    %651 = vxpose.xlu0.c.b16.cont [4/8] 0, 128
    %652 = vxpose.xlu0.c.b16.cont [5/8] 0, 128
    %653 = vxpose.xlu0.c.b16.cont [6/8] 0, 128
    %654 = vxpose.xlu0.c.b16.cont [7/8] 0, 128
    %655 = vxpose.xlu0.c.b16.end [8/8] 0, 128
    %v656 = vpop.trf.xlu0
    %v657 = vpop.trf.xlu0
    %v658 = vpop.trf.xlu0
    %v659 = vpop.trf.xlu0
    %v660 = vpop.trf.xlu0
    %v661 = vpop.trf.xlu0
    %v662 = vpop.trf.xlu0
    %v663 = vpop.trf.xlu0
    %v665 = vsel %vm409, %v656, 0
    %v668 = vsel %vm413, %v346, 0
    %670 = vmatpush.bf16.msra.mxu0 0
    %671 = vmatpush.bf16.msra.mxu0 0
    %672 = vmatpush.bf16.msra.mxu0 0
    %673 = vmatpush.bf16.msra.mxu0 0
    %674 = vmatpush.bf16.msra.mxu0 0
    %675 = vmatpush.bf16.msra.mxu0 0
    %676 = vmatpush.bf16.msra.mxu0 0
    %677 = vmatpush.bf16.msra.mxu0 %v668
    %678 = vmatmul.bf16.gmra.mxu0 %v665
    %v679 = vpop.f32.mrf.mxu0
    %v680 = vadd.f32 %v391, %v679
    %v681 = vpop.f32.mrf.mxu0
    %v682 = vadd.f32 %v392, %v681
    %683 = vdwg.mxu0
    %v684 = vsel %vm431, %v680, -inf
    %685 = vmax.xlane.f32.xlu0 %v684
    %v686 = vpop.xlane.xlu0 %685
    %v687 = vsel %vm431, %v682, -inf
    %688 = vmax.xlane.f32.xlu0 %v687
    %v689 = vpop.xlane.xlu0 %688
    %v690 = vsub.f32 %v680, %v686
    %v691 = vsub.f32 %v682, %v689
    %v692 = vmul.f32 %v690, 1.442695
    %v693 = vpow.pop %v692
    %v694 = vmul.f32 %v691, 1.442695
    %v695 = vpow.pop %v694
    %v696 = vsel %vm431, %v693, 0.0
    %697 = vadd.xlane.f32.xlu0 %v696
    %v698 = vpop.xlane.xlu0 %697
    %v699 = vsel %vm431, %v695, 0.0
    %700 = vadd.xlane.f32.xlu0 %v699
    %v701 = vpop.xlane.xlu0 %700
    %v702 = vrcp.pop %v698
    %v703 = vmul.f32 %v698, %v702
    %v704 = vsub.f32 1.0, %v703
    %v705 = vmul.f32 %v702, %v704
    %v706 = vadd.f32 %v702, %v705
    %vm707 = vweird.f32 %v698
    %vm708 = vweird.f32 %v702
    %vm709 = vmor %vm707, %vm708
    %v710 = vsel %vm709, %v702, %v706
    %v711 = vand.u32 2147483647, %v698
    %vm712 = vcmp.eq.f32.partialorder %v711, 8.507059e+37
    %v713 = vand.u32 %v698, 2147483648
    %v714 = vor.u32 1.1754944e-38, %v713
    %v715 = vsel %vm712, %v714, %v710
    %v716 = vrcp.pop %v701
    %v717 = vmul.f32 %v701, %v716
    %v718 = vsub.f32 1.0, %v717
    %v719 = vmul.f32 %v716, %v718
    %v720 = vadd.f32 %v716, %v719
    %vm721 = vweird.f32 %v701
    %vm722 = vweird.f32 %v716
    %vm723 = vmor %vm721, %vm722
    %v724 = vsel %vm723, %v716, %v720
    %v725 = vand.u32 2147483647, %v701
    %vm726 = vcmp.eq.f32.partialorder %v725, 8.507059e+37
    %v727 = vand.u32 %v701, 2147483648
    %v728 = vor.u32 1.1754944e-38, %v727
    %v729 = vsel %vm726, %v728, %v724
    %v730 = vmul.f32 %v693, %v715
    %v731 = vmul.f32 %v695, %v729
    %v732 = vpack.c.bf16 %v731, %v730
    %v734 = vsel %vm431, %v732, 0
    %v737 = vsel %vm431, %v350, 0
    %739 = vmatpush.bf16.xpose.msra.mxu0 0
    %740 = vmatpush.bf16.xpose.msra.mxu0 0
    %741 = vmatpush.bf16.xpose.msra.mxu0 0
    %742 = vmatpush.bf16.xpose.msra.mxu0 0
    %743 = vmatpush.bf16.xpose.msra.mxu0 0
    %744 = vmatpush.bf16.xpose.msra.mxu0 0
    %745 = vmatpush.bf16.xpose.msra.mxu0 0
    %746 = vmatpush.bf16.xpose.msra.mxu0 %v737
    %747 = vmatmul.bf16.gmra.mxu0 %v734
    %v748 = vpop.f32.mrf.mxu0
    %v749 = vadd.f32 0.0, %v748
    %v750 = vpop.f32.mrf.mxu0
    %v751 = vadd.f32 0.0, %v750
    %752 = vdwg.mxu0
    %v753 = vpack.c.bf16 %v751, %v749
    %v755 = vsel %vm409, %v753, 0
    %v758 = vsel %vm413, %v354, 0
    %760 = vmatpush.bf16.msra.mxu0 0
    %761 = vmatpush.bf16.msra.mxu0 0
    %762 = vmatpush.bf16.msra.mxu0 0
    %763 = vmatpush.bf16.msra.mxu0 0
    %764 = vmatpush.bf16.msra.mxu0 0
    %765 = vmatpush.bf16.msra.mxu0 0
    %766 = vmatpush.bf16.msra.mxu0 0
    %767 = vmatpush.bf16.msra.mxu0 %v758
    %768 = vmatmul.bf16.gmra.mxu0 %v755
    %v769 = vpop.f32.mrf.mxu0
    %v770 = vadd.f32 0.0, %v769
    %v771 = vpop.f32.mrf.mxu0
    %v772 = vadd.f32 0.0, %v771
    %773 = vdwg.mxu0
    %v774 = vadd.f32 %v644, %v770
    %v775 = vadd.f32 %v646, %v772
    %776 = vxpose.xlu0.c.b16.start [1/8] %v343, 128
    %777 = vxpose.xlu0.c.b16.cont [2/8] 0, 128
    %778 = vxpose.xlu0.c.b16.cont [3/8] 0, 128
    %779 = vxpose.xlu0.c.b16.cont [4/8] 0, 128
    %780 = vxpose.xlu0.c.b16.cont [5/8] 0, 128
    %781 = vxpose.xlu0.c.b16.cont [6/8] 0, 128
    %782 = vxpose.xlu0.c.b16.cont [7/8] 0, 128
    %783 = vxpose.xlu0.c.b16.end [8/8] 0, 128
    %v784 = vpop.trf.xlu0
    %v785 = vpop.trf.xlu0
    %v786 = vpop.trf.xlu0
    %v787 = vpop.trf.xlu0
    %v788 = vpop.trf.xlu0
    %v789 = vpop.trf.xlu0
    %v790 = vpop.trf.xlu0
    %v791 = vpop.trf.xlu0
    %v793 = vsel %vm409, %v784, 0
    %v796 = vsel %vm413, %v347, 0
    %798 = vmatpush.bf16.msra.mxu0 0
    %799 = vmatpush.bf16.msra.mxu0 0
    %800 = vmatpush.bf16.msra.mxu0 0
    %801 = vmatpush.bf16.msra.mxu0 0
    %802 = vmatpush.bf16.msra.mxu0 0
    %803 = vmatpush.bf16.msra.mxu0 0
    %804 = vmatpush.bf16.msra.mxu0 0
    %805 = vmatpush.bf16.msra.mxu0 %v796
    %806 = vmatmul.bf16.gmra.mxu0 %v793
    %v807 = vpop.f32.mrf.mxu0
    %v808 = vadd.f32 %v391, %v807
    %v809 = vpop.f32.mrf.mxu0
    %v810 = vadd.f32 %v392, %v809
    %811 = vdwg.mxu0
    %v812 = vsel %vm431, %v808, -inf
    %813 = vmax.xlane.f32.xlu0 %v812
    %v814 = vpop.xlane.xlu0 %813
    %v815 = vsel %vm431, %v810, -inf
    %816 = vmax.xlane.f32.xlu0 %v815
    %v817 = vpop.xlane.xlu0 %816
    %v818 = vsub.f32 %v808, %v814
    %v819 = vsub.f32 %v810, %v817
    %v820 = vmul.f32 %v818, 1.442695
    %v821 = vpow.pop %v820
    %v822 = vmul.f32 %v819, 1.442695
    %v823 = vpow.pop %v822
    %v824 = vsel %vm431, %v821, 0.0
    %825 = vadd.xlane.f32.xlu0 %v824
    %v826 = vpop.xlane.xlu0 %825
    %v827 = vsel %vm431, %v823, 0.0
    %828 = vadd.xlane.f32.xlu0 %v827
    %v829 = vpop.xlane.xlu0 %828
    %v830 = vrcp.pop %v826
    %v831 = vmul.f32 %v826, %v830
    %v832 = vsub.f32 1.0, %v831
    %v833 = vmul.f32 %v830, %v832
    %v834 = vadd.f32 %v830, %v833
    %vm835 = vweird.f32 %v826
    %vm836 = vweird.f32 %v830
    %vm837 = vmor %vm835, %vm836
    %v838 = vsel %vm837, %v830, %v834
    %v839 = vand.u32 2147483647, %v826
    %vm840 = vcmp.eq.f32.partialorder %v839, 8.507059e+37
    %v841 = vand.u32 %v826, 2147483648
    %v842 = vor.u32 1.1754944e-38, %v841
    %v843 = vsel %vm840, %v842, %v838
    %v844 = vrcp.pop %v829
    %v845 = vmul.f32 %v829, %v844
    %v846 = vsub.f32 1.0, %v845
    %v847 = vmul.f32 %v844, %v846
    %v848 = vadd.f32 %v844, %v847
    %vm849 = vweird.f32 %v829
    %vm850 = vweird.f32 %v844
    %vm851 = vmor %vm849, %vm850
    %v852 = vsel %vm851, %v844, %v848
    %v853 = vand.u32 2147483647, %v829
    %vm854 = vcmp.eq.f32.partialorder %v853, 8.507059e+37
    %v855 = vand.u32 %v829, 2147483648
    %v856 = vor.u32 1.1754944e-38, %v855
    %v857 = vsel %vm854, %v856, %v852
    %v858 = vmul.f32 %v821, %v843
    %v859 = vmul.f32 %v823, %v857
    %v860 = vpack.c.bf16 %v859, %v858
    %v862 = vsel %vm431, %v860, 0
    %v865 = vsel %vm431, %v351, 0
    %867 = vmatpush.bf16.xpose.msra.mxu0 0
    %868 = vmatpush.bf16.xpose.msra.mxu0 0
    %869 = vmatpush.bf16.xpose.msra.mxu0 0
    %870 = vmatpush.bf16.xpose.msra.mxu0 0
    %871 = vmatpush.bf16.xpose.msra.mxu0 0
    %872 = vmatpush.bf16.xpose.msra.mxu0 0
    %873 = vmatpush.bf16.xpose.msra.mxu0 0
    %874 = vmatpush.bf16.xpose.msra.mxu0 %v865
    %875 = vmatmul.bf16.gmra.mxu0 %v862
    %v876 = vpop.f32.mrf.mxu0
    %v877 = vadd.f32 0.0, %v876
    %v878 = vpop.f32.mrf.mxu0
    %v879 = vadd.f32 0.0, %v878
    %880 = vdwg.mxu0
    %v881 = vpack.c.bf16 %v879, %v877
    %v883 = vsel %vm409, %v881, 0
    %v886 = vsel %vm413, %v355, 0
    %888 = vmatpush.bf16.msra.mxu0 0
    %889 = vmatpush.bf16.msra.mxu0 0
    %890 = vmatpush.bf16.msra.mxu0 0
    %891 = vmatpush.bf16.msra.mxu0 0
    %892 = vmatpush.bf16.msra.mxu0 0
    %893 = vmatpush.bf16.msra.mxu0 0
    %894 = vmatpush.bf16.msra.mxu0 0
    %895 = vmatpush.bf16.msra.mxu0 %v886
    %896 = vmatmul.bf16.gmra.mxu0 %v883
    %v897 = vpop.f32.mrf.mxu0
    %v898 = vadd.f32 0.0, %v897
    %v899 = vpop.f32.mrf.mxu0
    %v900 = vadd.f32 0.0, %v899
    %901 = vdwg.mxu0
    %v902 = vadd.f32 %v774, %v898
    %v903 = vadd.f32 %v775, %v900
    %v904 = vld [vmem:[%s4] sm:$0x1]
    %v906 = vperm.slane %v904, 0
    %v908 = vadd.f32 %v902, %v906
    %v909 = vadd.f32 %v903, %v906
    %910 = vst [vmem:[#allocation2] sm:$0xff] %v908
    %911 = vst [vmem:[#allocation2 + $0x8] sm:$0xff] %v909
    // Predicated region
    $region30: #{tpu_custom_call.1} parent=1 // pred_check
      _
    $region31: #{tpu_custom_call.1} parent=1 // pred_check_branch
      %913 = sbr.rel (0) target = $region33
    $region32: #{tpu_custom_call.1} parent=1 // pred_region
      %915 = vsyncadd [#allocation3], 0
      %s916 = sshll.u32 [#allocation2], 4
      %s917 = int_to_ptr.vmem [resolvable:$true] %s916
      %s918 = sshll.u32 %s7, 4
      %s919 = int_to_ptr.hbm [resolvable:$true] %s918
      %924 = dma.vmem_to_hbm [thread:$0]  %s917, 256, %s919, [#allocation3], 128, 128, 8
    $region33: #{tpu_custom_call.1} parent=1 // pred_fallthru
      _
    // Predicated region
    $region34: #{tpu_custom_call.1} parent=1 // pred_check
      _
    $region35: #{tpu_custom_call.1} parent=1 // pred_check_branch
      %926 = sbr.rel (0) target = $region37
    $region36: #{tpu_custom_call.1} parent=1 // pred_region
      %928 = dma.done [#allocation3], 256
    $region37: #{tpu_custom_call.1} parent=1 // pred_fallthru
      _
    %929 = vsyncpa [#allocation3], 1

</llo_original>
